<compile_context>
chip_gen: v5e
topology: v5e:2x2
jax: 0.10.0
libtpu: 0.0.40
codegen_flags: <defaults>
</compile_context>

<pallas_src>
import jax
import jax.numpy as jnp
from jax.experimental import pallas as pl
from jax.experimental.pallas import tpu as pltpu


def _round_down(v, m):
    return (v // m) * m


def _round_up(v, m):
    return ((v + m - 1) // m) * m


# --------------------------------------------------------------------------
# Kernel
# --------------------------------------------------------------------------
def neuraln_kernel(params_ref, x_ref, o_ref):
    # params_ref (SMEM, folded): [a1,c1,g1, a2,c2,g2, a3,c3,g3, const, w20]
    #   a_i = 0.5*w0i, c_i = 0.5*b0i, g_i = 0.5*w1i, const = 0.5*(w11+w12+w13)
    a1 = params_ref[0]
    c1 = params_ref[1]
    g1 = params_ref[2]
    a2 = params_ref[3]
    c2 = params_ref[4]
    g2 = params_ref[5]
    a3 = params_ref[6]
    c3 = params_ref[7]
    g3 = params_ref[8]
    const = params_ref[9]
    w20 = params_ref[10]

    # Stream at native dtype, compute in f32 (v5e has no bf16 VPU/EUP, and we
    # need f32 accuracy for the 1e-5 tolerance).
    x = x_ref[...].astype(jnp.float32)

    # w1i * sigmoid(w0i*x + b0i) == g_i * tanh(a_i*x + c_i) + g_i
    # with the summed g_i terms pre-folded into `const`.
    s = (g1 * jnp.tanh(x * a1 + c1)
         + g2 * jnp.tanh(x * a2 + c2)
         + g3 * jnp.tanh(x * a3 + c3)
         + const)
    # TODO(synk): if a v7x bundle dump shows the single EUP slot binding,
    # replace this outer jnp.tanh with an f32 minimax rational on the (4-wide)
    # VPU to rebalance EUP vs VALU; keep the 4-push tanh form otherwise.
    o_ref[...] = (jnp.tanh(s) * w20).astype(o_ref.dtype)


# --------------------------------------------------------------------------
# Host-side helpers
# --------------------------------------------------------------------------
def _fold_params(params):
    """Fold the 10 raw scalars into 11 kernel scalars (host/XLA side, tiny)."""
    w00, b00, w01, b01, w02, b02, w11, w12, w13, w20 = (
        params[i] for i in range(10))
    half = jnp.float32(0.5)
    return jnp.stack([
        half * w00, half * b00, half * w11,
        half * w01, half * b01, half * w12,
        half * w02, half * b02, half * w13,
        half * (w11 + w12 + w13),
        w20,
    ]).astype(jnp.float32)


def _num_tensorcores():
    """Best-effort TensorCore count of one addressable device.

    2 for v7x and v4/v5p megacore parts, 1 for v5e/v6e.  Falls back to 1
    (the conservative choice: never shrink tiles) if detection fails.
    """
    try:
        dev = jax.devices()[0]
        v = getattr(dev, "num_cores", None)
        if isinstance(v, int) and 1 <= v <= 8:
            return v
        kind = str(getattr(dev, "device_kind", "")).lower()
        if "lite" in kind or "v5e" in kind or "v6e" in kind or "v6 lite" in kind:
            return 1
        if "v4" in kind or "v5" in kind or "v7" in kind or "tpu7" in kind:
            return 2
    except Exception:
        pass
    return 1


def _canonicalize_2d(x, sub):
    """Collapse to 2-D; prefer a wide lane-dense slab when it reshapes evenly."""
    if x.ndim == 2:
        x2 = x
    elif x.ndim < 2:
        x2 = x.reshape(1, -1)
    else:
        x2 = x.reshape(-1, x.shape[-1])
    total = x2.shape[0] * x2.shape[1]
    if x2.shape[-1] < 512:
        for w in (4096, 2048, 1024, 512):
            if total % w == 0 and total // w >= sub:
                return x2.reshape(total // w, w)
    return x2


def _pick_tiles(B, N, dtype, max_tile_bytes, num_cores):
    """Pick (tm, tn): tm % sub == 0 or tm == B; tn % 128 == 0 or tn == N.

    Uses fixed-size tiles with a pl.cdiv grid (ragged edge blocks masked by
    Pallas), so no divisor search and no 8x128 fallback cliff.
    """
    bytes_per = jnp.dtype(dtype).itemsize
    sub = max(8, 32 // bytes_per)      # sublane multiple: 8 f32, 16 bf16
    lane = 128

    # Lane (last) dim: full row if a sub-row slab fits the tile budget, else a
    # big multiple of 128 (edge block masked).
    if N * sub * bytes_per <= max_tile_bytes:
        tn = N
    else:
        tn = _round_down(max_tile_bytes // (sub * bytes_per), lane)
        tn = max(lane, min(tn, _round_down(N, lane)))

    # Sublane dim: as many rows as fit the per-tile budget.
    if B <= sub:
        tm = B                          # full dim (legal even if unaligned)
    else:
        tm = _round_down(max_tile_bytes // (max(tn, 1) * bytes_per), sub)
        tm = max(sub, min(tm, _round_down(B, sub)))

    # Only shrink tiles to get >= 2 "parallel" programs on 2-TC parts; keep
    # the single largest tile on 1-TC v5e/v6e.
    if num_cores >= 2 and pl.cdiv(B, tm) * pl.cdiv(N, tn) < num_cores:
        if B > sub:
            tm = max(sub, _round_up(pl.cdiv(B, num_cores), sub))
        elif N > lane:
            tn = max(lane, _round_up(pl.cdiv(N, num_cores), lane))
    return tm, tn


# --------------------------------------------------------------------------
# Public wrapper
# --------------------------------------------------------------------------
def neuraln_forward(x, params, *, max_tile_bytes=4 << 20):
    """Elementwise NeuralN forward.  x: any shape, f32 or bf16.  params: (10,)."""
    orig_shape = x.shape
    itemsize = jnp.dtype(x.dtype).itemsize
    sub = max(8, 32 // itemsize)

    x2 = _canonicalize_2d(x, sub)
    B, N = x2.shape
    total = B * N

    num_cores = _num_tensorcores()
    tm, tn = _pick_tiles(B, N, x.dtype, max_tile_bytes, num_cores)
    grid = (pl.cdiv(B, tm), pl.cdiv(N, tn))

    folded = _fold_params(params)

    cost = pl.CostEstimate(
        flops=13 * total,
        transcendentals=4 * total,
        bytes_accessed=2 * total * itemsize + 11 * 4,
    )

    out2 = pl.pallas_call(
        neuraln_kernel,
        out_shape=jax.ShapeDtypeStruct((B, N), x.dtype),
        grid_spec=pltpu.PrefetchScalarGridSpec(
            num_scalar_prefetch=0,
            grid=grid,
            in_specs=[
                pl.BlockSpec(memory_space=pltpu.SMEM),        # folded scalars
                pl.BlockSpec((tm, tn), lambda i, j: (i, j)),  # x tile
            ],
            out_specs=pl.BlockSpec((tm, tn), lambda i, j: (i, j)),
        ),
        compiler_params=pltpu.CompilerParams(
            dimension_semantics=("parallel", "parallel"),
            vmem_limit_bytes=32 * 1024 * 1024,
        ),
        cost_estimate=cost,
    )(folded, x2)

    return out2.reshape(orig_shape)


def neuraln_reference(x, params):
    """Pure-JAX reference matching the PyTorch module exactly (sigmoid form)."""
    w00, b00, w01, b01, w02, b02, w11, w12, w13, w20 = (
        params[i] for i in range(10))
    l1 = jax.nn.sigmoid(x * w00 + b00) * w11
    l2 = jax.nn.sigmoid(x * w01 + b01) * w12
    l3 = jax.nn.sigmoid(x * w02 + b02) * w13
    return jnp.tanh(l1 + l2 + l3) * w20


if __name__ == "__main__":
    key = jax.random.PRNGKey(0)
    k_params, k1, k2, k3 = jax.random.split(key, 4)

    # 10 scalar parameters, uniform [0,1) like torch.rand(1) in __init__.
    params = jax.random.uniform(k_params, (10,), dtype=jnp.float32)

    # f32, tile-friendly shape (batch=16, features=128).
    x = jax.random.normal(k1, (16, 128), dtype=jnp.float32)
    out = jax.block_until_ready(neuraln_forward(x, params))
    ref = neuraln_reference(x, params)
    assert out.shape == x.shape and out.dtype == x.dtype
    assert jnp.allclose(out, ref, atol=1e-5, rtol=1e-5), "f32 mismatch"

    # Awkward, non-(8,128)-divisible shape -> exercises the cdiv/ragged path.
    xa = jax.random.normal(k2, (13, 200), dtype=jnp.float32)
    outa = jax.block_until_ready(neuraln_forward(xa, params))
    refa = neuraln_reference(xa, params)
    assert outa.shape == xa.shape
    assert jnp.allclose(outa, refa, atol=1e-5, rtol=1e-5), "ragged mismatch"

    # bf16 I/O path (f32 compute in-kernel) -- the HBM-bound v5e/v6e lever.
    xb = jax.random.normal(k3, (32, 256), dtype=jnp.float32).astype(jnp.bfloat16)
    outb = jax.block_until_ready(neuraln_forward(xb, params))
    refb = neuraln_reference(xb.astype(jnp.float32), params)
    assert outb.shape == xb.shape and outb.dtype == jnp.bfloat16
    assert jnp.allclose(outb.astype(jnp.float32), refb, atol=2e-2, rtol=2e-2), \
        "bf16 mismatch"

    print("KERNEL_OK")
</pallas_src>

<mosaic_0001>
module attributes {stable_mosaic.version = 11 : i64} {
  func.func @neuraln_kernel(%arg0: i32, %arg1: i32, %arg2: memref<11xf32, #tpu.memory_space<smem>>, %arg3: memref<16x128xf32, #tpu.memory_space<vmem>>, %arg4: memref<16x128xf32, #tpu.memory_space<vmem>>) attributes {dimension_semantics = [#tpu.dimension_semantics<parallel>, #tpu.dimension_semantics<parallel>], iteration_bounds = array<i64: 1, 1>, scalar_prefetch = 0 : i64, scratch_operands = 0 : i64, tpu.core_type = #tpu.core_type<tc>, window_params = [{transform_indices = @transform_0, window_bounds = array<i64: 11>}, {transform_indices = @transform_1, window_bounds = array<i64: 16, 128>}, {transform_indices = @transform_2, window_bounds = array<i64: 16, 128>}]} {
    %c0 = arith.constant 0 : index
    %0 = memref.load %arg2[%c0] : memref<11xf32, #tpu.memory_space<smem>>
    %c1 = arith.constant 1 : index
    %1 = memref.load %arg2[%c1] : memref<11xf32, #tpu.memory_space<smem>>
    %c2 = arith.constant 2 : index
    %2 = memref.load %arg2[%c2] : memref<11xf32, #tpu.memory_space<smem>>
    %c3 = arith.constant 3 : index
    %3 = memref.load %arg2[%c3] : memref<11xf32, #tpu.memory_space<smem>>
    %c4 = arith.constant 4 : index
    %4 = memref.load %arg2[%c4] : memref<11xf32, #tpu.memory_space<smem>>
    %c5 = arith.constant 5 : index
    %5 = memref.load %arg2[%c5] : memref<11xf32, #tpu.memory_space<smem>>
    %c6 = arith.constant 6 : index
    %6 = memref.load %arg2[%c6] : memref<11xf32, #tpu.memory_space<smem>>
    %c7 = arith.constant 7 : index
    %7 = memref.load %arg2[%c7] : memref<11xf32, #tpu.memory_space<smem>>
    %c8 = arith.constant 8 : index
    %8 = memref.load %arg2[%c8] : memref<11xf32, #tpu.memory_space<smem>>
    %c9 = arith.constant 9 : index
    %9 = memref.load %arg2[%c9] : memref<11xf32, #tpu.memory_space<smem>>
    %c10 = arith.constant 10 : index
    %10 = memref.load %arg2[%c10] : memref<11xf32, #tpu.memory_space<smem>>
    %c0_0 = arith.constant 0 : index
    %c0_1 = arith.constant 0 : index
    %11 = vector.load %arg3[%c0_0, %c0_1] : memref<16x128xf32, #tpu.memory_space<vmem>>, vector<16x128xf32>
    %12 = vector.broadcast %0 : f32 to vector<16x128xf32>
    %13 = arith.mulf %11, %12 : vector<16x128xf32>
    %14 = vector.broadcast %1 : f32 to vector<16x128xf32>
    %15 = arith.addf %13, %14 : vector<16x128xf32>
    %16 = math.tanh %15 : vector<16x128xf32>
    %17 = vector.broadcast %2 : f32 to vector<16x128xf32>
    %18 = arith.mulf %17, %16 : vector<16x128xf32>
    %19 = vector.broadcast %3 : f32 to vector<16x128xf32>
    %20 = arith.mulf %11, %19 : vector<16x128xf32>
    %21 = vector.broadcast %4 : f32 to vector<16x128xf32>
    %22 = arith.addf %20, %21 : vector<16x128xf32>
    %23 = math.tanh %22 : vector<16x128xf32>
    %24 = vector.broadcast %5 : f32 to vector<16x128xf32>
    %25 = arith.mulf %24, %23 : vector<16x128xf32>
    %26 = arith.addf %18, %25 : vector<16x128xf32>
    %27 = vector.broadcast %6 : f32 to vector<16x128xf32>
    %28 = arith.mulf %11, %27 : vector<16x128xf32>
    %29 = vector.broadcast %7 : f32 to vector<16x128xf32>
    %30 = arith.addf %28, %29 : vector<16x128xf32>
    %31 = math.tanh %30 : vector<16x128xf32>
    %32 = vector.broadcast %8 : f32 to vector<16x128xf32>
    %33 = arith.mulf %32, %31 : vector<16x128xf32>
    %34 = arith.addf %26, %33 : vector<16x128xf32>
    %35 = vector.broadcast %9 : f32 to vector<16x128xf32>
    %36 = arith.addf %34, %35 : vector<16x128xf32>
    %37 = math.tanh %36 : vector<16x128xf32>
    %38 = vector.broadcast %10 : f32 to vector<16x128xf32>
    %39 = arith.mulf %37, %38 : vector<16x128xf32>
    %c0_2 = arith.constant 0 : index
    %c0_3 = arith.constant 0 : index
    %40 = vector.load %arg4[%c0_2, %c0_3] : memref<16x128xf32, #tpu.memory_space<vmem>>, vector<16x128xf32>
    tpu.vector_store %arg4[%c0_2, %c0_3], %39 {strides = array<i32>} : memref<16x128xf32, #tpu.memory_space<vmem>>, vector<16x128xf32>,
    return
  }
  func.func @transform_0(%arg0: i32, %arg1: i32) -> i32 {
    %c0_i32 = arith.constant 0 : i32
    %c0_i32_0 = arith.constant 0 : i32
    return %c0_i32 : i32
  }
  func.func @transform_1(%arg0: i32, %arg1: i32) -> (i32, i32) {
    %c0_i32 = arith.constant 0 : i32
    return %arg0, %arg1 : i32, i32
  }
  func.func @transform_2(%arg0: i32, %arg1: i32) -> (i32, i32) {
    %c0_i32 = arith.constant 0 : i32
    return %arg0, %arg1 : i32, i32
  }
}

</mosaic_0001>

<llo_original>
// kernel: tpu_custom_call.1
$region0: #{tpu_custom_call.1}
  #allocation0 [shape = 'u32[]', space=smem, size = 0x4, offset = 0x4, fixed_abs, tag = 'smem constant byte address 0x4 - core index']
  #allocation1 [shape = 'u32[72,128]{1,0:T(1,128)}', space=vmem, size = 0x9000, scoped, tag = 'internal scratch']
  %s0 = inlined_call_operand.hbm [shape: f32[11], index: 0, kind: input, shape index: {}]
  %s1 = inlined_call_operand.hbm [shape: f32[16,128], index: 1, kind: input, shape index: {}]
  %s2 = inlined_call_operand.hbm [shape: f32[16,128], index: 2, kind: output, shape index: {}]
  %s3 = sld [smem:[#allocation0]]
  $region26: #{tpu_custom_call.1} parent=0
    _
  %s5 = ssub.s32 1, %s3
  %s6 = scalar_select 0, %s5, %s3
  $region1: #{tpu_custom_call.1} parent=0
    #allocation2 [shape = 'u8[512]{0}', space=smem, size = 0x200, scoped, tag = 'input window, operand 0, single buffered']
    #allocation3 [shape = 's32[1]{0}', space=sflag, size = 0x4, scoped, tag = 'scoped memory for tpu_custom_call.1']
    #allocation4 [shape = 's32[1]{0}', space=sflag, size = 0x4, scoped, tag = 'scoped memory for tpu_custom_call.1']
    #allocation5 [shape = 's32[1]{0}', space=sflag, size = 0x4, scoped, tag = 'scoped memory for tpu_custom_call.1']
    #allocation6 [shape = 'u8[8192]{0}', space=vmem, size = 0x2000, scoped, tag = 'input window, operand 1, single buffered']
    #allocation7 [shape = 'u8[8192]{0}', space=vmem, size = 0x2000, scoped, tag = 'output window, operand 0, single buffered']
    %7 = vsyncpa [#allocation5], 0
    %8 = vsyncpa [#allocation3], 0
    %9 = vsyncpa [#allocation4], 0
    // Predicated region
    $region2: #{tpu_custom_call.1} parent=1 // pred_check
      _
    $region3: #{tpu_custom_call.1} parent=1 // pred_check_branch
      %11 = sbr.rel (0) target = $region5
    $region4: #{tpu_custom_call.1} parent=1 // pred_region
      %13 = vsyncadd [#allocation5], 0
      %s15 = sshll.u32 %s0, 4
      %s16 = int_to_ptr.hbm [resolvable:$true] %s15
      %18 = dma.hbm_to_smem %s16, 16, [#allocation2], [#allocation5]
    $region5: #{tpu_custom_call.1} parent=1 // pred_fallthru
      _
    // Predicated region
    $region6: #{tpu_custom_call.1} parent=1 // pred_check
      _
    $region7: #{tpu_custom_call.1} parent=1 // pred_check_branch
      %20 = sbr.rel (0) target = $region9
    $region8: #{tpu_custom_call.1} parent=1 // pred_region
      %22 = vsyncadd [#allocation3], 0
      %s23 = sshll.u32 %s1, 4
      %s24 = int_to_ptr.hbm [resolvable:$true] %s23
      %s25 = sshll.u32 [#allocation6], 4
      %s26 = int_to_ptr.vmem [resolvable:$true] %s25
      %31 = dma.hbm_to_vmem [thread:$0]  %s24, 256, %s26, [#allocation3], 128, 128, 8
    $region9: #{tpu_custom_call.1} parent=1 // pred_fallthru
      _
    // Predicated region
    $region10: #{tpu_custom_call.1} parent=1 // pred_check
      _
    $region11: #{tpu_custom_call.1} parent=1 // pred_check_branch
      %33 = sbr.rel (0) target = $region13
    $region12: #{tpu_custom_call.1} parent=1 // pred_region
      %35 = dma.done [#allocation5], 16
    $region13: #{tpu_custom_call.1} parent=1 // pred_fallthru
      _
    // Predicated region
    $region14: #{tpu_custom_call.1} parent=1 // pred_check
      _
    $region15: #{tpu_custom_call.1} parent=1 // pred_check_branch
      %37 = sbr.rel (0) target = $region17
    $region16: #{tpu_custom_call.1} parent=1 // pred_region
      %39 = dma.done [#allocation3], 256
    $region17: #{tpu_custom_call.1} parent=1 // pred_fallthru
      _
    %40 = sfence
    %s41 = sld [smem:[#allocation2]]
    %s42 = sld [smem:[#allocation2 + $0x1]]
    %s43 = sld [smem:[#allocation2 + $0x2]]
    %s44 = sld [smem:[#allocation2 + $0x3]]
    %s45 = sld [smem:[#allocation2 + $0x4]]
    %s46 = sld [smem:[#allocation2 + $0x5]]
    %s47 = sld [smem:[#allocation2 + $0x6]]
    %s48 = sld [smem:[#allocation2 + $0x7]]
    %s49 = sld [smem:[#allocation2 + $0x8]]
    %s50 = sld [smem:[#allocation2 + $0x9]]
    %s51 = sld [smem:[#allocation2 + $0xa]]
    %v52 = vld [vmem:[#allocation6] sm:$0xff]
    %v53 = vld [vmem:[#allocation6 + $0x8] sm:$0xff]
    %v54 = vstv %s41
    %v55 = vmul.f32 %v52, %v54
    %v56 = vmul.f32 %v53, %v54
    %v57 = vstv %s42
    %v58 = vadd.f32 %v55, %v57
    %v59 = vadd.f32 %v56, %v57
    %v60 = vtanh.pop %v58
    %v61 = vtanh.pop %v59
    %v62 = vstv %s43
    %v63 = vmul.f32 %v62, %v60
    %v64 = vmul.f32 %v62, %v61
    %v65 = vstv %s44
    %v66 = vmul.f32 %v52, %v65
    %v67 = vmul.f32 %v53, %v65
    %v68 = vstv %s45
    %v69 = vadd.f32 %v66, %v68
    %v70 = vadd.f32 %v67, %v68
    %v71 = vtanh.pop %v69
    %v72 = vtanh.pop %v70
    %v73 = vstv %s46
    %v74 = vmul.f32 %v73, %v71
    %v75 = vmul.f32 %v73, %v72
    %v76 = vadd.f32 %v63, %v74
    %v77 = vadd.f32 %v64, %v75
    %v78 = vstv %s47
    %v79 = vmul.f32 %v52, %v78
    %v80 = vmul.f32 %v53, %v78
    %v81 = vstv %s48
    %v82 = vadd.f32 %v79, %v81
    %v83 = vadd.f32 %v80, %v81
    %v84 = vtanh.pop %v82
    %v85 = vtanh.pop %v83
    %v86 = vstv %s49
    %v87 = vmul.f32 %v86, %v84
    %v88 = vmul.f32 %v86, %v85
    %v89 = vadd.f32 %v76, %v87
    %v90 = vadd.f32 %v77, %v88
    %v91 = vstv %s50
    %v92 = vadd.f32 %v89, %v91
    %v93 = vadd.f32 %v90, %v91
    %v94 = vtanh.pop %v92
    %v95 = vtanh.pop %v93
    %v96 = vstv %s51
    %v97 = vmul.f32 %v94, %v96
    %v98 = vmul.f32 %v95, %v96
    %99 = vst [vmem:[#allocation7] sm:$0xff] %v97
    %100 = vst [vmem:[#allocation7 + $0x8] sm:$0xff] %v98
    // Predicated region
    $region18: #{tpu_custom_call.1} parent=1 // pred_check
      _
    $region19: #{tpu_custom_call.1} parent=1 // pred_check_branch
      %102 = sbr.rel (0) target = $region21
    $region20: #{tpu_custom_call.1} parent=1 // pred_region
      %104 = vsyncadd [#allocation4], 0
      %s105 = sshll.u32 [#allocation7], 4
      %s106 = int_to_ptr.vmem [resolvable:$true] %s105
      %s107 = sshll.u32 %s2, 4
      %s108 = int_to_ptr.hbm [resolvable:$true] %s107
      %113 = dma.vmem_to_hbm [thread:$0]  %s106, 256, %s108, [#allocation4], 128, 128, 8
    $region21: #{tpu_custom_call.1} parent=1 // pred_fallthru
      _
    // Predicated region
    $region22: #{tpu_custom_call.1} parent=1 // pred_check
      _
    $region23: #{tpu_custom_call.1} parent=1 // pred_check_branch
      %115 = sbr.rel (0) target = $region25
    $region24: #{tpu_custom_call.1} parent=1 // pred_region
      %117 = dma.done [#allocation4], 256
    $region25: #{tpu_custom_call.1} parent=1 // pred_fallthru
      _
    %118 = vsyncpa [#allocation3], 1
    %119 = vsyncpa [#allocation4], 1
    %120 = vsyncpa [#allocation5], 1

</llo_original>
